<compile_context>
chip_gen: v7x
topology: tpu7x:2x2x1
jax: 0.10.0
libtpu: 0.0.40
codegen_flags: <defaults>
</compile_context>

<pallas_src>
import functools
import math

import jax
import jax.numpy as jnp
from jax.experimental import pallas as pl
from jax.experimental.pallas import tpu as pltpu


# ---------------------------------------------------------------------------
# Kernel 1: fused Q/K/V projections -> bf16, head-major (B, H, S, d_k).
# ---------------------------------------------------------------------------
def _qkv_proj_kernel(q_ref, k_ref, v_ref,
                     wq_ref, bq_ref, wk_ref, bk_ref, wv_ref, bv_ref,
                     qp_ref, kp_ref, vp_ref,
                     *, num_heads: int, d_k: int):
    def project(x_ref, w_ref, b_ref, out_ref):
        # Full-width matmul (contraction = D, output width = D) on the MXU,
        # f32 accumulation, bias added post-accumulation.
        p = jnp.dot(x_ref[0], w_ref[...],
                    preferred_element_type=jnp.float32) + b_ref[...]
        p = p.astype(out_ref.dtype)
        # split_head while storing: head h -> out_ref[0, h] (lane-dense,
        # offset-0 stores).  This is the only place the head relayout happens,
        # once per sequence tile.
        for h in range(num_heads):
            out_ref[0, h] = p[:, h * d_k:(h + 1) * d_k]

    # Sequential (Q, then K, then V) so only one (tile, D) f32 projection
    # transient is live at a time.
    project(q_ref, wq_ref, bq_ref, qp_ref)
    project(k_ref, wk_ref, bk_ref, kp_ref)
    project(v_ref, wv_ref, bv_ref, vp_ref)


# ---------------------------------------------------------------------------
# Kernel 2: per-head attention + output projection for one (batch, q-tile).
# ---------------------------------------------------------------------------
def _attention_kernel(qp_ref, kp_ref, vp_ref, wo_ref, bo_ref,
                      o_ref, attn_ref,
                      *, num_heads: int, d_k: int):
    # qp_ref: (1, H, TQ, d_k) bf16 (already scaled by 1/sqrt(d_k) via W_Q/b_Q)
    # kp_ref, vp_ref: (1, H, S, d_k) bf16
    # TODO(synk): for num_heads >= 16 switch to a fori_loop over a head-major
    # output scratch to bound live ranges of the (TQ, S) intermediates.
    for h in range(num_heads):
        qh = qp_ref[0, h]                                  # (TQ, d_k) bf16
        kh = kp_ref[0, h]                                  # (S,  d_k) bf16
        vh = vp_ref[0, h]                                  # (S,  d_k) bf16

        # Q @ K^T with the transpose absorbed into the contraction (MXU path).
        s = jax.lax.dot_general(
            qh, kh, dimension_numbers=(((1,), (1,)), ((), ())),
            preferred_element_type=jnp.float32)            # (TQ, S) f32

        # Numerically stable softmax; normalization deferred to the (TQ, d_k)
        # PV result.  exp kept f32 for portability (v5e EUP has no bf16).
        s = s - jnp.max(s, axis=-1, keepdims=True)
        p = jnp.exp(s)
        r = jnp.sum(p, axis=-1, keepdims=True)             # (TQ, 1) f32
        head = jnp.dot(p.astype(jnp.bfloat16), vh,
                       preferred_element_type=jnp.float32)  # (TQ, d_k) f32
        head = head * pl.reciprocal(r, approx=True)

        # concatenate_heads: write head h's slice of the combined (TQ, D) slab.
        # Kept combined (not head-major) so the output projection stays a
        # single full-contraction-D matmul; this store *is* the concat relayout.
        attn_ref[:, h * d_k:(h + 1) * d_k] = head.astype(attn_ref.dtype)

    out = jnp.dot(attn_ref[...], wo_ref[...],
                  preferred_element_type=jnp.float32) + bo_ref[...]
    o_ref[0] = out.astype(o_ref.dtype)


# ---------------------------------------------------------------------------
# Host-side wrapper.
# ---------------------------------------------------------------------------
def _pick_seq_tile(S, max_tile=256):
    """Largest tile <= max_tile that divides S and keeps sublane alignment."""
    if S <= max_tile:
        return S
    for t in range(max_tile - max_tile % 8, 0, -8):
        if S % t == 0:
            return t
    # TODO(synk): ragged last tile not handled; fall back to the full sequence.
    return S


def _device_vmem_bytes(default=64 * 1024 * 1024):
    """Physical VMEM per core; conservative 64 MiB (v7x) fallback."""
    try:
        info = pltpu.get_tpu_info()
        return int(getattr(info, "vmem_capacity_bytes", default))
    except Exception:
        return default


def _vmem_limit(estimate_bytes):
    want = int(estimate_bytes * 1.5) + (1 << 20)       # 50% slack + 1 MiB
    return max(32 * 1024 * 1024, min(want, _device_vmem_bytes()))


def multi_head_attention(Q, K, V, params, *, num_heads: int, q_tile=None):
    """Pallas forward pass matching the PyTorch module (masks=None).

    Q, K, V: (B, S, D) float32.  params: torch-layout (out, in) weights
    W_Q/W_K/W_V/W_O and (D,) biases b_Q/b_K/b_V/b_O.
    """
    # TODO(synk): optional attention mask (masks != None path) not implemented.
    B, S, D = Q.shape
    assert D % num_heads == 0
    d_k = D // num_heads

    # NOTE: sweep the tile down to 128 on v5e; 256 is a good v6e/v7x default.
    tile = _pick_seq_tile(S, q_tile if q_tile is not None else 256)
    n_tiles = S // tile

    bf16, f32 = jnp.bfloat16, jnp.float32
    scale = 1.0 / math.sqrt(d_k)

    # bf16 activations (halves input DMA); weights transposed to (in, out) and
    # cast to bf16; 1/sqrt(d_k) folded into W_Q / b_Q on the host.
    q_in, k_in, v_in = Q.astype(bf16), K.astype(bf16), V.astype(bf16)
    wq = (params["W_Q"].T * scale).astype(bf16)
    wk = params["W_K"].T.astype(bf16)
    wv = params["W_V"].T.astype(bf16)
    wo = params["W_O"].T.astype(bf16)
    bq = (params["b_Q"] * scale).reshape(1, D).astype(f32)
    bk = params["b_K"].reshape(1, D).astype(f32)
    bv = params["b_V"].reshape(1, D).astype(f32)
    bo = params["b_O"].reshape(1, D).astype(f32)

    # Constant-index weight/bias blocks: single-buffered (no re-fetch, so
    # double buffering only wastes VMEM).
    w_spec = pl.BlockSpec((D, D), lambda b, t: (0, 0),
                          pipeline_mode=pl.Buffered(1))
    b_spec = pl.BlockSpec((1, D), lambda b, t: (0, 0),
                          pipeline_mode=pl.Buffered(1))

    # ---- Pass 1: Q/K/V projections -> head-major bf16 (B, H, S, d_k). -------
    x_spec = pl.BlockSpec((1, tile, D), lambda b, t: (b, t, 0))
    hm_spec = pl.BlockSpec((1, num_heads, tile, d_k), lambda b, t: (b, 0, t, 0))
    hm_shape = jax.ShapeDtypeStruct((B, num_heads, S, d_k), bf16)

    proj_est = (2 * 3 * tile * D * 2          # q/k/v input blocks (2 buffers)
                + 3 * (D * D * 2 + D * 4)     # weights + biases (1 buffer)
                + 2 * 3 * tile * D * 2        # projected output blocks
                + tile * D * 4)               # one live f32 projection transient
    qp, kp, vp = pl.pallas_call(
        functools.partial(_qkv_proj_kernel, num_heads=num_heads, d_k=d_k),
        out_shape=(hm_shape, hm_shape, hm_shape),
        grid_spec=pltpu.PrefetchScalarGridSpec(
            num_scalar_prefetch=0,
            grid=(B, n_tiles),
            in_specs=[x_spec, x_spec, x_spec,
                      w_spec, b_spec, w_spec, b_spec, w_spec, b_spec],
            out_specs=(hm_spec, hm_spec, hm_spec)),
        compiler_params=pltpu.CompilerParams(
            dimension_semantics=("parallel", "parallel"),
            vmem_limit_bytes=_vmem_limit(proj_est)),
    )(q_in, k_in, v_in, wq, bq, wk, bk, wv, bv)

    # ---- Pass 2: per-head attention + output projection. --------------------
    qp_spec = pl.BlockSpec((1, num_heads, tile, d_k), lambda b, t: (b, 0, t, 0))
    kv_spec = pl.BlockSpec((1, num_heads, S, d_k), lambda b, t: (b, 0, 0, 0))
    out_spec = pl.BlockSpec((1, tile, D), lambda b, t: (b, t, 0))

    attn_est = (2 * tile * D * 2              # projected-Q blocks (2 buffers)
                + 2 * 2 * S * D * 2           # projected K/V blocks (2 buffers)
                + D * D * 2 + D * 4           # wo + bo (1 buffer)
                + 2 * tile * D * 4            # f32 output blocks (2 buffers)
                + tile * D * 2                # combined-heads scratch
                + 2 * tile * S * 4)           # f32 score/prob transients
    return pl.pallas_call(
        functools.partial(_attention_kernel, num_heads=num_heads, d_k=d_k),
        out_shape=jax.ShapeDtypeStruct((B, S, D), Q.dtype),
        grid_spec=pltpu.PrefetchScalarGridSpec(
            num_scalar_prefetch=0,
            grid=(B, n_tiles),
            in_specs=[qp_spec, kv_spec, kv_spec, w_spec, b_spec],
            out_specs=out_spec,
            scratch_shapes=[pltpu.VMEM((tile, D), bf16)]),
        compiler_params=pltpu.CompilerParams(
            # K/V projection is hoisted into pass 1, so nothing is carried
            # across q-tiles and both grid axes can shard across TensorCores.
            dimension_semantics=("parallel", "parallel"),
            vmem_limit_bytes=_vmem_limit(attn_est)),
    )(qp, kp, vp, wo, bo)


# ---------------------------------------------------------------------------
# Pure-JAX f32 reference and a deterministic self-test.
# ---------------------------------------------------------------------------
def _reference_mha(Q, K, V, params, *, num_heads: int):
    """Plain-JAX f32 reference matching the PyTorch module (masks=None)."""
    B, S, D = Q.shape
    d_k = D // num_heads

    def linear(x, w, b):  # torch layout: w (out, in)
        return x @ w.T + b

    def split(x):
        return x.reshape(B, S, num_heads, d_k).transpose(0, 2, 1, 3)

    q = split(linear(Q, params["W_Q"], params["b_Q"]))
    k = split(linear(K, params["W_K"], params["b_K"]))
    v = split(linear(V, params["W_V"], params["b_V"]))

    scores = jnp.einsum("bhqd,bhkd->bhqk", q, k) / jnp.sqrt(jnp.float32(d_k))
    weights = jax.nn.softmax(scores, axis=-1)
    out = jnp.einsum("bhqk,bhkd->bhqd", weights, v)
    out = out.transpose(0, 2, 1, 3).reshape(B, S, D)
    return linear(out, params["W_O"], params["b_O"])


def init_params(key, d_model):
    """Deterministic nn.Linear-style init: U(-1/sqrt(in), 1/sqrt(in))."""
    bound = 1.0 / jnp.sqrt(jnp.float32(d_model))
    keys = jax.random.split(key, 8)
    names = ["W_Q", "b_Q", "W_K", "b_K", "W_V", "b_V", "W_O", "b_O"]
    params = {}
    for i, name in enumerate(names):
        shape = (d_model, d_model) if name.startswith("W") else (d_model,)
        params[name] = jax.random.uniform(
            keys[i], shape, dtype=jnp.float32, minval=-bound, maxval=bound)
    return params


if __name__ == "__main__":
    batch, seq, d_model, num_heads = 2, 8, 32, 4

    key = jax.random.PRNGKey(0)
    kq, kk, kv, kp = jax.random.split(key, 4)
    Q = jax.random.normal(kq, (batch, seq, d_model), dtype=jnp.float32)
    K = jax.random.normal(kk, (batch, seq, d_model), dtype=jnp.float32)
    V = jax.random.normal(kv, (batch, seq, d_model), dtype=jnp.float32)
    params = init_params(kp, d_model)

    out = multi_head_attention(Q, K, V, params, num_heads=num_heads)
    out = jax.block_until_ready(out)

    ref = _reference_mha(Q, K, V, params, num_heads=num_heads)
    assert out.shape == (batch, seq, d_model)
    # bf16 MXU inputs + approximate reciprocal -> relaxed tolerance vs f32 ref.
    assert jnp.allclose(out, ref, atol=2e-2, rtol=2e-2), "mismatch vs reference"

    print("KERNEL_OK")
</pallas_src>

<mosaic_0001>
module attributes {stable_mosaic.version = 11 : i64} {
  func.func @_qkv_proj_kernel(%arg0: i32, %arg1: i32, %arg2: memref<1x8x32xbf16, #tpu.memory_space<vmem>>, %arg3: memref<1x8x32xbf16, #tpu.memory_space<vmem>>, %arg4: memref<1x8x32xbf16, #tpu.memory_space<vmem>>, %arg5: memref<32x32xbf16, #tpu.memory_space<vmem>>, %arg6: memref<1x32xf32, #tpu.memory_space<vmem>>, %arg7: memref<32x32xbf16, #tpu.memory_space<vmem>>, %arg8: memref<1x32xf32, #tpu.memory_space<vmem>>, %arg9: memref<32x32xbf16, #tpu.memory_space<vmem>>, %arg10: memref<1x32xf32, #tpu.memory_space<vmem>>, %arg11: memref<1x4x8x8xbf16, #tpu.memory_space<vmem>>, %arg12: memref<1x4x8x8xbf16, #tpu.memory_space<vmem>>, %arg13: memref<1x4x8x8xbf16, #tpu.memory_space<vmem>>) attributes {dimension_semantics = [#tpu.dimension_semantics<parallel>, #tpu.dimension_semantics<parallel>], iteration_bounds = array<i64: 2, 1>, scalar_prefetch = 0 : i64, scratch_operands = 0 : i64, tpu.core_type = #tpu.core_type<tc>, window_params = [{transform_indices = @transform_0, window_bounds = array<i64: 1, 8, 32>}, {transform_indices = @transform_1, window_bounds = array<i64: 1, 8, 32>}, {transform_indices = @transform_2, window_bounds = array<i64: 1, 8, 32>}, {pipeline_mode = #tpu.pipeline_mode<synchronous>, transform_indices = @transform_3, window_bounds = array<i64: 32, 32>}, {pipeline_mode = #tpu.pipeline_mode<synchronous>, transform_indices = @transform_4, window_bounds = array<i64: 1, 32>}, {pipeline_mode = #tpu.pipeline_mode<synchronous>, transform_indices = @transform_5, window_bounds = array<i64: 32, 32>}, {pipeline_mode = #tpu.pipeline_mode<synchronous>, transform_indices = @transform_6, window_bounds = array<i64: 1, 32>}, {pipeline_mode = #tpu.pipeline_mode<synchronous>, transform_indices = @transform_7, window_bounds = array<i64: 32, 32>}, {pipeline_mode = #tpu.pipeline_mode<synchronous>, transform_indices = @transform_8, window_bounds = array<i64: 1, 32>}, {transform_indices = @transform_9, window_bounds = array<i64: 1, 4, 8, 8>}, {transform_indices = @transform_10, window_bounds = array<i64: 1, 4, 8, 8>}, {transform_indices = @transform_11, window_bounds = array<i64: 1, 4, 8, 8>}]} {
    %c0 = arith.constant 0 : index
    %c0_0 = arith.constant 0 : index
    %c0_1 = arith.constant 0 : index
    %0 = vector.load %arg2[%c0, %c0_0, %c0_1] : memref<1x8x32xbf16, #tpu.memory_space<vmem>>, vector<1x8x32xbf16>
    %1 = vector.shape_cast %0 : vector<1x8x32xbf16> to vector<8x32xbf16>
    %c0_2 = arith.constant 0 : index
    %c0_3 = arith.constant 0 : index
    %2 = vector.load %arg5[%c0_2, %c0_3] : memref<32x32xbf16, #tpu.memory_space<vmem>>, vector<32x32xbf16>
    %cst = arith.constant dense<0.000000e+00> : vector<8x32xf32>
    %3 = tpu.matmul %1, %2, %cst {dimension_numbers = #tpu.dot_dimension_numbers<[1], [0], [0], [1], [0, 0, 1, 1], [], []>} : vector<8x32xbf16>, vector<32x32xbf16>, vector<8x32xf32> -> vector<8x32xf32>
    %c0_4 = arith.constant 0 : index
    %c0_5 = arith.constant 0 : index
    %4 = vector.load %arg6[%c0_4, %c0_5] : memref<1x32xf32, #tpu.memory_space<vmem>>, vector<1x32xf32>
    %5 = vector.broadcast %4 : vector<1x32xf32> to vector<8x32xf32>
    %6 = arith.addf %3, %5 : vector<8x32xf32>
    %7 = arith.truncf %6 : vector<8x32xf32> to vector<8x32xbf16>
    %8 = vector.extract_strided_slice %7 {offsets = [0, 0], sizes = [8, 8], strides = [1, 1]} : vector<8x32xbf16> to vector<8x8xbf16>
    %c0_6 = arith.constant 0 : index
    %c0_7 = arith.constant 0 : index
    %c0_8 = arith.constant 0 : index
    %c0_9 = arith.constant 0 : index
    %9 = vector.load %arg11[%c0_6, %c0_7, %c0_8, %c0_9] : memref<1x4x8x8xbf16, #tpu.memory_space<vmem>>, vector<1x1x8x8xbf16>
    %10 = vector.shape_cast %9 : vector<1x1x8x8xbf16> to vector<8x8xbf16>
    %11 = vector.shape_cast %8 : vector<8x8xbf16> to vector<1x1x8x8xbf16>
    tpu.vector_store %arg11[%c0_6, %c0_7, %c0_8, %c0_9], %11 {strides = array<i32>} : memref<1x4x8x8xbf16, #tpu.memory_space<vmem>>, vector<1x1x8x8xbf16>,
    %12 = vector.extract_strided_slice %7 {offsets = [0, 8], sizes = [8, 8], strides = [1, 1]} : vector<8x32xbf16> to vector<8x8xbf16>
    %c0_10 = arith.constant 0 : index
    %c1 = arith.constant 1 : index
    %c0_11 = arith.constant 0 : index
    %c0_12 = arith.constant 0 : index
    %13 = vector.load %arg11[%c0_10, %c1, %c0_11, %c0_12] : memref<1x4x8x8xbf16, #tpu.memory_space<vmem>>, vector<1x1x8x8xbf16>
    %14 = vector.shape_cast %13 : vector<1x1x8x8xbf16> to vector<8x8xbf16>
    %15 = vector.shape_cast %12 : vector<8x8xbf16> to vector<1x1x8x8xbf16>
    tpu.vector_store %arg11[%c0_10, %c1, %c0_11, %c0_12], %15 {strides = array<i32>} : memref<1x4x8x8xbf16, #tpu.memory_space<vmem>>, vector<1x1x8x8xbf16>,
    %16 = vector.extract_strided_slice %7 {offsets = [0, 16], sizes = [8, 8], strides = [1, 1]} : vector<8x32xbf16> to vector<8x8xbf16>
    %c0_13 = arith.constant 0 : index
    %c2 = arith.constant 2 : index
    %c0_14 = arith.constant 0 : index
    %c0_15 = arith.constant 0 : index
    %17 = vector.load %arg11[%c0_13, %c2, %c0_14, %c0_15] : memref<1x4x8x8xbf16, #tpu.memory_space<vmem>>, vector<1x1x8x8xbf16>
    %18 = vector.shape_cast %17 : vector<1x1x8x8xbf16> to vector<8x8xbf16>
    %19 = vector.shape_cast %16 : vector<8x8xbf16> to vector<1x1x8x8xbf16>
    tpu.vector_store %arg11[%c0_13, %c2, %c0_14, %c0_15], %19 {strides = array<i32>} : memref<1x4x8x8xbf16, #tpu.memory_space<vmem>>, vector<1x1x8x8xbf16>,
    %20 = vector.extract_strided_slice %7 {offsets = [0, 24], sizes = [8, 8], strides = [1, 1]} : vector<8x32xbf16> to vector<8x8xbf16>
    %c0_16 = arith.constant 0 : index
    %c3 = arith.constant 3 : index
    %c0_17 = arith.constant 0 : index
    %c0_18 = arith.constant 0 : index
    %21 = vector.load %arg11[%c0_16, %c3, %c0_17, %c0_18] : memref<1x4x8x8xbf16, #tpu.memory_space<vmem>>, vector<1x1x8x8xbf16>
    %22 = vector.shape_cast %21 : vector<1x1x8x8xbf16> to vector<8x8xbf16>
    %23 = vector.shape_cast %20 : vector<8x8xbf16> to vector<1x1x8x8xbf16>
    tpu.vector_store %arg11[%c0_16, %c3, %c0_17, %c0_18], %23 {strides = array<i32>} : memref<1x4x8x8xbf16, #tpu.memory_space<vmem>>, vector<1x1x8x8xbf16>,
    %c0_19 = arith.constant 0 : index
    %c0_20 = arith.constant 0 : index
    %c0_21 = arith.constant 0 : index
    %24 = vector.load %arg3[%c0_19, %c0_20, %c0_21] : memref<1x8x32xbf16, #tpu.memory_space<vmem>>, vector<1x8x32xbf16>
    %25 = vector.shape_cast %24 : vector<1x8x32xbf16> to vector<8x32xbf16>
    %c0_22 = arith.constant 0 : index
    %c0_23 = arith.constant 0 : index
    %26 = vector.load %arg7[%c0_22, %c0_23] : memref<32x32xbf16, #tpu.memory_space<vmem>>, vector<32x32xbf16>
    %cst_24 = arith.constant dense<0.000000e+00> : vector<8x32xf32>
    %27 = tpu.matmul %25, %26, %cst_24 {dimension_numbers = #tpu.dot_dimension_numbers<[1], [0], [0], [1], [0, 0, 1, 1], [], []>} : vector<8x32xbf16>, vector<32x32xbf16>, vector<8x32xf32> -> vector<8x32xf32>
    %c0_25 = arith.constant 0 : index
    %c0_26 = arith.constant 0 : index
    %28 = vector.load %arg8[%c0_25, %c0_26] : memref<1x32xf32, #tpu.memory_space<vmem>>, vector<1x32xf32>
    %29 = vector.broadcast %28 : vector<1x32xf32> to vector<8x32xf32>
    %30 = arith.addf %27, %29 : vector<8x32xf32>
    %31 = arith.truncf %30 : vector<8x32xf32> to vector<8x32xbf16>
    %32 = vector.extract_strided_slice %31 {offsets = [0, 0], sizes = [8, 8], strides = [1, 1]} : vector<8x32xbf16> to vector<8x8xbf16>
    %c0_27 = arith.constant 0 : index
    %c0_28 = arith.constant 0 : index
    %c0_29 = arith.constant 0 : index
    %c0_30 = arith.constant 0 : index
    %33 = vector.load %arg12[%c0_27, %c0_28, %c0_29, %c0_30] : memref<1x4x8x8xbf16, #tpu.memory_space<vmem>>, vector<1x1x8x8xbf16>
    %34 = vector.shape_cast %33 : vector<1x1x8x8xbf16> to vector<8x8xbf16>
    %35 = vector.shape_cast %32 : vector<8x8xbf16> to vector<1x1x8x8xbf16>
    tpu.vector_store %arg12[%c0_27, %c0_28, %c0_29, %c0_30], %35 {strides = array<i32>} : memref<1x4x8x8xbf16, #tpu.memory_space<vmem>>, vector<1x1x8x8xbf16>,
    %36 = vector.extract_strided_slice %31 {offsets = [0, 8], sizes = [8, 8], strides = [1, 1]} : vector<8x32xbf16> to vector<8x8xbf16>
    %c0_31 = arith.constant 0 : index
    %c1_32 = arith.constant 1 : index
    %c0_33 = arith.constant 0 : index
    %c0_34 = arith.constant 0 : index
    %37 = vector.load %arg12[%c0_31, %c1_32, %c0_33, %c0_34] : memref<1x4x8x8xbf16, #tpu.memory_space<vmem>>, vector<1x1x8x8xbf16>
    %38 = vector.shape_cast %37 : vector<1x1x8x8xbf16> to vector<8x8xbf16>
    %39 = vector.shape_cast %36 : vector<8x8xbf16> to vector<1x1x8x8xbf16>
    tpu.vector_store %arg12[%c0_31, %c1_32, %c0_33, %c0_34], %39 {strides = array<i32>} : memref<1x4x8x8xbf16, #tpu.memory_space<vmem>>, vector<1x1x8x8xbf16>,
    %40 = vector.extract_strided_slice %31 {offsets = [0, 16], sizes = [8, 8], strides = [1, 1]} : vector<8x32xbf16> to vector<8x8xbf16>
    %c0_35 = arith.constant 0 : index
    %c2_36 = arith.constant 2 : index
    %c0_37 = arith.constant 0 : index
    %c0_38 = arith.constant 0 : index
    %41 = vector.load %arg12[%c0_35, %c2_36, %c0_37, %c0_38] : memref<1x4x8x8xbf16, #tpu.memory_space<vmem>>, vector<1x1x8x8xbf16>
    %42 = vector.shape_cast %41 : vector<1x1x8x8xbf16> to vector<8x8xbf16>
    %43 = vector.shape_cast %40 : vector<8x8xbf16> to vector<1x1x8x8xbf16>
    tpu.vector_store %arg12[%c0_35, %c2_36, %c0_37, %c0_38], %43 {strides = array<i32>} : memref<1x4x8x8xbf16, #tpu.memory_space<vmem>>, vector<1x1x8x8xbf16>,
    %44 = vector.extract_strided_slice %31 {offsets = [0, 24], sizes = [8, 8], strides = [1, 1]} : vector<8x32xbf16> to vector<8x8xbf16>
    %c0_39 = arith.constant 0 : index
    %c3_40 = arith.constant 3 : index
    %c0_41 = arith.constant 0 : index
    %c0_42 = arith.constant 0 : index
    %45 = vector.load %arg12[%c0_39, %c3_40, %c0_41, %c0_42] : memref<1x4x8x8xbf16, #tpu.memory_space<vmem>>, vector<1x1x8x8xbf16>
    %46 = vector.shape_cast %45 : vector<1x1x8x8xbf16> to vector<8x8xbf16>
    %47 = vector.shape_cast %44 : vector<8x8xbf16> to vector<1x1x8x8xbf16>
    tpu.vector_store %arg12[%c0_39, %c3_40, %c0_41, %c0_42], %47 {strides = array<i32>} : memref<1x4x8x8xbf16, #tpu.memory_space<vmem>>, vector<1x1x8x8xbf16>,
    %c0_43 = arith.constant 0 : index
    %c0_44 = arith.constant 0 : index
    %c0_45 = arith.constant 0 : index
    %48 = vector.load %arg4[%c0_43, %c0_44, %c0_45] : memref<1x8x32xbf16, #tpu.memory_space<vmem>>, vector<1x8x32xbf16>
    %49 = vector.shape_cast %48 : vector<1x8x32xbf16> to vector<8x32xbf16>
    %c0_46 = arith.constant 0 : index
    %c0_47 = arith.constant 0 : index
    %50 = vector.load %arg9[%c0_46, %c0_47] : memref<32x32xbf16, #tpu.memory_space<vmem>>, vector<32x32xbf16>
    %cst_48 = arith.constant dense<0.000000e+00> : vector<8x32xf32>
    %51 = tpu.matmul %49, %50, %cst_48 {dimension_numbers = #tpu.dot_dimension_numbers<[1], [0], [0], [1], [0, 0, 1, 1], [], []>} : vector<8x32xbf16>, vector<32x32xbf16>, vector<8x32xf32> -> vector<8x32xf32>
    %c0_49 = arith.constant 0 : index
    %c0_50 = arith.constant 0 : index
    %52 = vector.load %arg10[%c0_49, %c0_50] : memref<1x32xf32, #tpu.memory_space<vmem>>, vector<1x32xf32>
    %53 = vector.broadcast %52 : vector<1x32xf32> to vector<8x32xf32>
    %54 = arith.addf %51, %53 : vector<8x32xf32>
    %55 = arith.truncf %54 : vector<8x32xf32> to vector<8x32xbf16>
    %56 = vector.extract_strided_slice %55 {offsets = [0, 0], sizes = [8, 8], strides = [1, 1]} : vector<8x32xbf16> to vector<8x8xbf16>
    %c0_51 = arith.constant 0 : index
    %c0_52 = arith.constant 0 : index
    %c0_53 = arith.constant 0 : index
    %c0_54 = arith.constant 0 : index
    %57 = vector.load %arg13[%c0_51, %c0_52, %c0_53, %c0_54] : memref<1x4x8x8xbf16, #tpu.memory_space<vmem>>, vector<1x1x8x8xbf16>
    %58 = vector.shape_cast %57 : vector<1x1x8x8xbf16> to vector<8x8xbf16>
    %59 = vector.shape_cast %56 : vector<8x8xbf16> to vector<1x1x8x8xbf16>
    tpu.vector_store %arg13[%c0_51, %c0_52, %c0_53, %c0_54], %59 {strides = array<i32>} : memref<1x4x8x8xbf16, #tpu.memory_space<vmem>>, vector<1x1x8x8xbf16>,
    %60 = vector.extract_strided_slice %55 {offsets = [0, 8], sizes = [8, 8], strides = [1, 1]} : vector<8x32xbf16> to vector<8x8xbf16>
    %c0_55 = arith.constant 0 : index
    %c1_56 = arith.constant 1 : index
    %c0_57 = arith.constant 0 : index
    %c0_58 = arith.constant 0 : index
    %61 = vector.load %arg13[%c0_55, %c1_56, %c0_57, %c0_58] : memref<1x4x8x8xbf16, #tpu.memory_space<vmem>>, vector<1x1x8x8xbf16>
    %62 = vector.shape_cast %61 : vector<1x1x8x8xbf16> to vector<8x8xbf16>
    %63 = vector.shape_cast %60 : vector<8x8xbf16> to vector<1x1x8x8xbf16>
    tpu.vector_store %arg13[%c0_55, %c1_56, %c0_57, %c0_58], %63 {strides = array<i32>} : memref<1x4x8x8xbf16, #tpu.memory_space<vmem>>, vector<1x1x8x8xbf16>,
    %64 = vector.extract_strided_slice %55 {offsets = [0, 16], sizes = [8, 8], strides = [1, 1]} : vector<8x32xbf16> to vector<8x8xbf16>
    %c0_59 = arith.constant 0 : index
    %c2_60 = arith.constant 2 : index
    %c0_61 = arith.constant 0 : index
    %c0_62 = arith.constant 0 : index
    %65 = vector.load %arg13[%c0_59, %c2_60, %c0_61, %c0_62] : memref<1x4x8x8xbf16, #tpu.memory_space<vmem>>, vector<1x1x8x8xbf16>
    %66 = vector.shape_cast %65 : vector<1x1x8x8xbf16> to vector<8x8xbf16>
    %67 = vector.shape_cast %64 : vector<8x8xbf16> to vector<1x1x8x8xbf16>
    tpu.vector_store %arg13[%c0_59, %c2_60, %c0_61, %c0_62], %67 {strides = array<i32>} : memref<1x4x8x8xbf16, #tpu.memory_space<vmem>>, vector<1x1x8x8xbf16>,
    %68 = vector.extract_strided_slice %55 {offsets = [0, 24], sizes = [8, 8], strides = [1, 1]} : vector<8x32xbf16> to vector<8x8xbf16>
    %c0_63 = arith.constant 0 : index
    %c3_64 = arith.constant 3 : index
    %c0_65 = arith.constant 0 : index
    %c0_66 = arith.constant 0 : index
    %69 = vector.load %arg13[%c0_63, %c3_64, %c0_65, %c0_66] : memref<1x4x8x8xbf16, #tpu.memory_space<vmem>>, vector<1x1x8x8xbf16>
    %70 = vector.shape_cast %69 : vector<1x1x8x8xbf16> to vector<8x8xbf16>
    %71 = vector.shape_cast %68 : vector<8x8xbf16> to vector<1x1x8x8xbf16>
    tpu.vector_store %arg13[%c0_63, %c3_64, %c0_65, %c0_66], %71 {strides = array<i32>} : memref<1x4x8x8xbf16, #tpu.memory_space<vmem>>, vector<1x1x8x8xbf16>,
    return
  }
  func.func @transform_0(%arg0: i32, %arg1: i32) -> (i32, i32, i32) {
    %c0_i32 = arith.constant 0 : i32
    %c0_i32_0 = arith.constant 0 : i32
    return %arg0, %arg1, %c0_i32 : i32, i32, i32
  }
  func.func @transform_1(%arg0: i32, %arg1: i32) -> (i32, i32, i32) {
    %c0_i32 = arith.constant 0 : i32
    %c0_i32_0 = arith.constant 0 : i32
    return %arg0, %arg1, %c0_i32 : i32, i32, i32
  }
  func.func @transform_2(%arg0: i32, %arg1: i32) -> (i32, i32, i32) {
    %c0_i32 = arith.constant 0 : i32
    %c0_i32_0 = arith.constant 0 : i32
    return %arg0, %arg1, %c0_i32 : i32, i32, i32
  }
  func.func @transform_3(%arg0: i32, %arg1: i32) -> (i32, i32) {
    %c0_i32 = arith.constant 0 : i32
    %c0_i32_0 = arith.constant 0 : i32
    %c0_i32_1 = arith.constant 0 : i32
    return %c0_i32, %c0_i32_0 : i32, i32
  }
  func.func @transform_4(%arg0: i32, %arg1: i32) -> (i32, i32) {
    %c0_i32 = arith.constant 0 : i32
    %c0_i32_0 = arith.constant 0 : i32
    %c0_i32_1 = arith.constant 0 : i32
    return %c0_i32, %c0_i32_0 : i32, i32
  }
  func.func @transform_5(%arg0: i32, %arg1: i32) -> (i32, i32) {
    %c0_i32 = arith.constant 0 : i32
    %c0_i32_0 = arith.constant 0 : i32
    %c0_i32_1 = arith.constant 0 : i32
    return %c0_i32, %c0_i32_0 : i32, i32
  }
  func.func @transform_6(%arg0: i32, %arg1: i32) -> (i32, i32) {
    %c0_i32 = arith.constant 0 : i32
    %c0_i32_0 = arith.constant 0 : i32
    %c0_i32_1 = arith.constant 0 : i32
    return %c0_i32, %c0_i32_0 : i32, i32
  }
  func.func @transform_7(%arg0: i32, %arg1: i32) -> (i32, i32) {
    %c0_i32 = arith.constant 0 : i32
    %c0_i32_0 = arith.constant 0 : i32
    %c0_i32_1 = arith.constant 0 : i32
    return %c0_i32, %c0_i32_0 : i32, i32
  }
  func.func @transform_8(%arg0: i32, %arg1: i32) -> (i32, i32) {
    %c0_i32 = arith.constant 0 : i32
    %c0_i32_0 = arith.constant 0 : i32
    %c0_i32_1 = arith.constant 0 : i32
    return %c0_i32, %c0_i32_0 : i32, i32
  }
  func.func @transform_9(%arg0: i32, %arg1: i32) -> (i32, i32, i32, i32) {
    %c0_i32 = arith.constant 0 : i32
    %c0_i32_0 = arith.constant 0 : i32
    %c0_i32_1 = arith.constant 0 : i32
    return %arg0, %c0_i32, %arg1, %c0_i32_0 : i32, i32, i32, i32
  }
  func.func @transform_10(%arg0: i32, %arg1: i32) -> (i32, i32, i32, i32) {
    %c0_i32 = arith.constant 0 : i32
    %c0_i32_0 = arith.constant 0 : i32
    %c0_i32_1 = arith.constant 0 : i32
    return %arg0, %c0_i32, %arg1, %c0_i32_0 : i32, i32, i32, i32
  }
  func.func @transform_11(%arg0: i32, %arg1: i32) -> (i32, i32, i32, i32) {
    %c0_i32 = arith.constant 0 : i32
    %c0_i32_0 = arith.constant 0 : i32
    %c0_i32_1 = arith.constant 0 : i32
    return %arg0, %c0_i32, %arg1, %c0_i32_0 : i32, i32, i32, i32
  }
}

</mosaic_0001>

<llo_original>
// kernel: tpu_custom_call.1
$region0: #{tpu_custom_call.1}
  #allocation0 [shape = 'u32[]', space=smem, size = 0x4, offset = 0x4, fixed_abs, tag = 'smem constant byte address 0x4 - core index']
  #allocation1 [shape = 'u32[144,128]{1,0:T(1,128)}', space=vmem, size = 0x12000, scoped, tag = 'internal scratch']
  %s0 = inlined_call_operand.hbm [shape: bf16[2,8,32], index: 0, kind: input, shape index: {}]
  %s1 = inlined_call_operand.hbm [shape: bf16[2,8,32], index: 1, kind: input, shape index: {}]
  %s2 = inlined_call_operand.hbm [shape: bf16[2,8,32], index: 2, kind: input, shape index: {}]
  %s3 = inlined_call_operand.hbm [shape: bf16[32,32], index: 3, kind: input, shape index: {}]
  %s4 = inlined_call_operand.vmem [shape: f32[1,32], index: 4, kind: input, shape index: {}]
  %s5 = inlined_call_operand.vmem [shape: bf16[32,32], index: 5, kind: input, shape index: {}]
  %s6 = inlined_call_operand.vmem [shape: f32[1,32], index: 6, kind: input, shape index: {}]
  %s7 = inlined_call_operand.hbm [shape: bf16[32,32], index: 7, kind: input, shape index: {}]
  %s8 = inlined_call_operand.vmem [shape: f32[1,32], index: 8, kind: input, shape index: {}]
  %s9 = inlined_call_operand.hbm [shape: bf16[2,4,8,8], index: 9, kind: output, shape index: {0}]
  %s10 = inlined_call_operand.hbm [shape: bf16[2,4,8,8], index: 10, kind: output, shape index: {1}]
  %s11 = inlined_call_operand.hbm [shape: bf16[2,4,8,8], index: 11, kind: output, shape index: {2}]
  %12 = xla_tuple %s9, %s10, %s11
  %s13 = sld [smem:[#allocation0]]
  $region105: #{tpu_custom_call.1} parent=0
    _
  %s15 = ssub.s32 1, %s13
  %s16 = scalar_select 0, %s15, %s13
  $region1: #{tpu_custom_call.1} parent=0
    #allocation2 [shape = 'u8[4096]{0}', space=vmem, size = 0x1000, scoped, tag = 'input window, operand 0']
    #allocation3 [shape = 's32[2]{0}', space=sflag, size = 0x8, scoped, tag = 'scoped memory for tpu_custom_call.1']
    #allocation4 [shape = 's32[2]{0}', space=sflag, size = 0x8, scoped, tag = 'scoped memory for tpu_custom_call.1']
    #allocation5 [shape = 'u8[4096]{0}', space=vmem, size = 0x1000, scoped, tag = 'input window, operand 1']
    #allocation6 [shape = 's32[2]{0}', space=sflag, size = 0x8, scoped, tag = 'scoped memory for tpu_custom_call.1']
    #allocation7 [shape = 'u8[4096]{0}', space=vmem, size = 0x1000, scoped, tag = 'input window, operand 2']
    #allocation8 [shape = 'u8[8192]{0}', space=vmem, size = 0x2000, scoped, tag = 'input window, operand 3, single buffered']
    #allocation9 [shape = 's32[1]{0}', space=sflag, size = 0x4, scoped, tag = 'scoped memory for tpu_custom_call.1']
    #allocation10 [shape = 'u8[8192]{0}', space=vmem, size = 0x2000, scoped, tag = 'input window, operand 7, single buffered']
    #allocation11 [shape = 'u8[16384]{0}', space=vmem, size = 0x4000, scoped, tag = 'output window, operand 0']
    #allocation12 [shape = 'u8[16384]{0}', space=vmem, size = 0x4000, scoped, tag = 'output window, operand 1']
    #allocation13 [shape = 's32[2]{0}', space=sflag, size = 0x8, scoped, tag = 'scoped memory for tpu_custom_call.1']
    #allocation14 [shape = 'u8[16384]{0}', space=vmem, size = 0x4000, scoped, tag = 'output window, operand 2']
    %17 = vsyncpa [#allocation3], 0
    %s18 = scalar_lea.sflag [#allocation3], 1
    %19 = vsyncpa %s18, 0
    %20 = vsyncpa [#allocation6], 0
    %s21 = scalar_lea.sflag [#allocation6], 1
    %22 = vsyncpa %s21, 0
    %23 = vsyncpa [#allocation9], 0
    %24 = vsyncpa [#allocation4], 0
    %s25 = scalar_lea.sflag [#allocation4], 1
    %26 = vsyncpa %s25, 0
    %27 = vsyncpa [#allocation13], 0
    %s28 = scalar_lea.sflag [#allocation13], 1
    %29 = vsyncpa %s28, 0
    loop: start=0, step=1, limit=4
    $region2: #{tpu_custom_call.1} parent=1 // loop_pre_header
      _
    $region3: #{tpu_custom_call.1} parent=1 // loop_header
      %s31 = sphi 0, %s35
      %p32 = scmp.ge.s32.totalorder %s31, 4
      %s38 = sphi 0, %s50
      %s39 = sphi 0, %s46
      %s40 = sphi 0, %s38
      %s41 = sphi 0, %s39
      %s42 = sphi 0, %s40
      %s43 = sphi 0, %s41
      %s55 = sphi 0, %s57
      %s58 = sphi 0, %s55
      %s59 = sphi 0, %s58
      %s75 = sphi 0, %s59
      %s83 = sphi 0, %s85
      %s86 = sphi 0, %s83
      %s87 = sphi 0, %s86
      %s103 = sphi 0, %s87
      %s111 = sphi 0, %s113
      %s114 = sphi 0, %s111
      %s115 = sphi 0, %s114
      %s131 = sphi 0, %s115
      %s135 = sphi 0, %s135
      %s137 = sphi 0, %s135
      %s138 = sphi 0, %s137
      %s152 = sphi 0, %s138
      %s156 = sphi 0, %s156
      %s158 = sphi 0, %s156
      %s159 = sphi 0, %s158
      %s173 = sphi 0, %s159
      %s177 = sphi 0, %s177
      %s179 = sphi 0, %s177
      %s180 = sphi 0, %s179
      %s194 = sphi 0, %s180
      %s198 = sphi 0, %s198
      %s200 = sphi 0, %s198
      %s201 = sphi 0, %s200
      %s215 = sphi 0, %s201
      %s219 = sphi 0, %s219
      %s221 = sphi 0, %s219
      %s222 = sphi 0, %s221
      %s236 = sphi 0, %s222
      %s240 = sphi 0, %s240
      %s242 = sphi 0, %s240
      %s243 = sphi 0, %s242
      %s257 = sphi 0, %s243
      %s265 = sphi 0, %s267
      %s268 = sphi 0, %s265
      %s269 = sphi 0, %s268
      %s285 = sphi 0, %s269
      %s293 = sphi 0, %s295
      %s296 = sphi 0, %s293
      %s297 = sphi 0, %s296
      %s313 = sphi 0, %s297
      %s321 = sphi 0, %s323
      %s324 = sphi 0, %s321
      %s325 = sphi 0, %s324
      %s341 = sphi 0, %s325
    $region4: #{tpu_custom_call.1} parent=1 // loop_header_branch
      %34 = sbr.rel (%p32) target = $region8
    $region5: #{tpu_custom_call.1} parent=1 // loop_body
      %s36 = ssub.s32 %s31, 1
      %s37 = ssub.s32 %s31, 2
      %s44 = sadd.s32 1, %s39
      %p45 = scmp.ge.s32.totalorder %s44, 1
      %s46 = scalar_select %p45, 0, %s44
      %s47 = sadd.s32 1, %s38
      %s48 = scalar_select %p45, %s47, %s38
      %p49 = scmp.ge.s32.totalorder %s48, 2
      %s50 = scalar_select %p49, 0, %s48
      %s51 = ssub.s32 %s38, %s50
      %s52 = ssub.s32 %s39, %s46
      %s53 = sor.u32 %s51, %s52
      %p54 = scmp.eq.s32.totalorder %s53, 0
      %s56 = sadd.s32 %s55, 1
      %s57 = scalar_select %p54, %s55, %s56
      %p60 = pneg %p54
      %p61 = scmp.eq.s32.totalorder %s31, 1
      %p62 = por %p60, %p61
      %p63 = scmp.ne.s32.totalorder %s55, %s58
      %p64 = scmp.eq.s32.totalorder %s31, 0
      %p65 = por %p63, %p64
      %p66 = scmp.ne.s32.totalorder %s55, %s58
      %p67 = scmp.eq.s32.totalorder %s36, 1
      %p68 = por %p66, %p67
      %p69 = scmp.ne.s32.totalorder %s58, %s59
      %p70 = scmp.eq.s32.totalorder %s36, 0
      %p71 = por %p69, %p70
      %p72 = scmp.ne.s32.totalorder %s58, %s59
      %p73 = scmp.eq.s32.totalorder %s37, 1
      %p74 = por %p72, %p73
      %p76 = scmp.ne.s32.totalorder %s59, %s75
      %p77 = scmp.eq.s32.totalorder %s37, 0
      %p78 = por %p76, %p77
      %s79 = ssub.s32 %s38, %s50
      %s80 = ssub.s32 %s39, %s46
      %s81 = sor.u32 %s79, %s80
      %p82 = scmp.eq.s32.totalorder %s81, 0
      %s84 = sadd.s32 %s83, 1
      %s85 = scalar_select %p82, %s83, %s84
      %p88 = pneg %p82
      %p89 = scmp.eq.s32.totalorder %s31, 1
      %p90 = por %p88, %p89
      %p91 = scmp.ne.s32.totalorder %s83, %s86
      %p92 = scmp.eq.s32.totalorder %s31, 0
      %p93 = por %p91, %p92
      %p94 = scmp.ne.s32.totalorder %s83, %s86
      %p95 = scmp.eq.s32.totalorder %s36, 1
      %p96 = por %p94, %p95
      %p97 = scmp.ne.s32.totalorder %s86, %s87
      %p98 = scmp.eq.s32.totalorder %s36, 0
      %p99 = por %p97, %p98
      %p100 = scmp.ne.s32.totalorder %s86, %s87
      %p101 = scmp.eq.s32.totalorder %s37, 1
      %p102 = por %p100, %p101
      %p104 = scmp.ne.s32.totalorder %s87, %s103
      %p105 = scmp.eq.s32.totalorder %s37, 0
      %p106 = por %p104, %p105
      %s107 = ssub.s32 %s38, %s50
      %s108 = ssub.s32 %s39, %s46
      %s109 = sor.u32 %s107, %s108
      %p110 = scmp.eq.s32.totalorder %s109, 0
      %s112 = sadd.s32 %s111, 1
      %s113 = scalar_select %p110, %s111, %s112
      %p116 = pneg %p110
      %p117 = scmp.eq.s32.totalorder %s31, 1
      %p118 = por %p116, %p117
      %p119 = scmp.ne.s32.totalorder %s111, %s114
      %p120 = scmp.eq.s32.totalorder %s31, 0
      %p121 = por %p119, %p120
      %p122 = scmp.ne.s32.totalorder %s111, %s114
      %p123 = scmp.eq.s32.totalorder %s36, 1
      %p124 = por %p122, %p123
      %p125 = scmp.ne.s32.totalorder %s114, %s115
      %p126 = scmp.eq.s32.totalorder %s36, 0
      %p127 = por %p125, %p126
      %p128 = scmp.ne.s32.totalorder %s114, %s115
      %p129 = scmp.eq.s32.totalorder %s37, 1
      %p130 = por %p128, %p129
      %p132 = scmp.ne.s32.totalorder %s115, %s131
      %p133 = scmp.eq.s32.totalorder %s37, 0
      %p134 = por %p132, %p133
      %s136 = sadd.s32 %s135, 1
      %p139 = scmp.eq.s32.totalorder %s31, 1
      %p140 = scmp.ne.s32.totalorder %s135, %s137
      %p141 = scmp.eq.s32.totalorder %s31, 0
      %p142 = por %p140, %p141
      %p143 = scmp.ne.s32.totalorder %s135, %s137
      %p144 = scmp.eq.s32.totalorder %s36, 1
      %p145 = por %p143, %p144
      %p146 = scmp.ne.s32.totalorder %s137, %s138
      %p147 = scmp.eq.s32.totalorder %s36, 0
      %p148 = por %p146, %p147
      %p149 = scmp.ne.s32.totalorder %s137, %s138
      %p150 = scmp.eq.s32.totalorder %s37, 1
      %p151 = por %p149, %p150
      %p153 = scmp.ne.s32.totalorder %s138, %s152
      %p154 = scmp.eq.s32.totalorder %s37, 0
      %p155 = por %p153, %p154
      %s157 = sadd.s32 %s156, 1
      %p160 = scmp.eq.s32.totalorder %s31, 1
      %p161 = scmp.ne.s32.totalorder %s156, %s158
      %p162 = scmp.eq.s32.totalorder %s31, 0
      %p163 = por %p161, %p162
      %p164 = scmp.ne.s32.totalorder %s156, %s158
      %p165 = scmp.eq.s32.totalorder %s36, 1
      %p166 = por %p164, %p165
      %p167 = scmp.ne.s32.totalorder %s158, %s159
      %p168 = scmp.eq.s32.totalorder %s36, 0
      %p169 = por %p167, %p168
      %p170 = scmp.ne.s32.totalorder %s158, %s159
      %p171 = scmp.eq.s32.totalorder %s37, 1
      %p172 = por %p170, %p171
      %p174 = scmp.ne.s32.totalorder %s159, %s173
      %p175 = scmp.eq.s32.totalorder %s37, 0
      %p176 = por %p174, %p175
      %s178 = sadd.s32 %s177, 1
      %p181 = scmp.eq.s32.totalorder %s31, 1
      %p182 = scmp.ne.s32.totalorder %s177, %s179
      %p183 = scmp.eq.s32.totalorder %s31, 0
      %p184 = por %p182, %p183
      %p185 = scmp.ne.s32.totalorder %s177, %s179
      %p186 = scmp.eq.s32.totalorder %s36, 1
      %p187 = por %p185, %p186
      %p188 = scmp.ne.s32.totalorder %s179, %s180
      %p189 = scmp.eq.s32.totalorder %s36, 0
      %p190 = por %p188, %p189
      %p191 = scmp.ne.s32.totalorder %s179, %s180
      %p192 = scmp.eq.s32.totalorder %s37, 1
      %p193 = por %p191, %p192
      %p195 = scmp.ne.s32.totalorder %s180, %s194
      %p196 = scmp.eq.s32.totalorder %s37, 0
      %p197 = por %p195, %p196
      %s199 = sadd.s32 %s198, 1
      %p202 = scmp.eq.s32.totalorder %s31, 1
      %p203 = scmp.ne.s32.totalorder %s198, %s200
      %p204 = scmp.eq.s32.totalorder %s31, 0
      %p205 = por %p203, %p204
      %p206 = scmp.ne.s32.totalorder %s198, %s200
      %p207 = scmp.eq.s32.totalorder %s36, 1
      %p208 = por %p206, %p207
      %p209 = scmp.ne.s32.totalorder %s200, %s201
      %p210 = scmp.eq.s32.totalorder %s36, 0
      %p211 = por %p209, %p210
      %p212 = scmp.ne.s32.totalorder %s200, %s201
      %p213 = scmp.eq.s32.totalorder %s37, 1
      %p214 = por %p212, %p213
      %p216 = scmp.ne.s32.totalorder %s201, %s215
      %p217 = scmp.eq.s32.totalorder %s37, 0
      %p218 = por %p216, %p217
      %s220 = sadd.s32 %s219, 1
      %p223 = scmp.eq.s32.totalorder %s31, 1
      %p224 = scmp.ne.s32.totalorder %s219, %s221
      %p225 = scmp.eq.s32.totalorder %s31, 0
      %p226 = por %p224, %p225
      %p227 = scmp.ne.s32.totalorder %s219, %s221
      %p228 = scmp.eq.s32.totalorder %s36, 1
      %p229 = por %p227, %p228
      %p230 = scmp.ne.s32.totalorder %s221, %s222
      %p231 = scmp.eq.s32.totalorder %s36, 0
      %p232 = por %p230, %p231
      %p233 = scmp.ne.s32.totalorder %s221, %s222
      %p234 = scmp.eq.s32.totalorder %s37, 1
      %p235 = por %p233, %p234
      %p237 = scmp.ne.s32.totalorder %s222, %s236
      %p238 = scmp.eq.s32.totalorder %s37, 0
      %p239 = por %p237, %p238
      %s241 = sadd.s32 %s240, 1
      %p244 = scmp.eq.s32.totalorder %s31, 1
      %p245 = scmp.ne.s32.totalorder %s240, %s242
      %p246 = scmp.eq.s32.totalorder %s31, 0
      %p247 = por %p245, %p246
      %p248 = scmp.ne.s32.totalorder %s240, %s242
      %p249 = scmp.eq.s32.totalorder %s36, 1
      %p250 = por %p248, %p249
      %p251 = scmp.ne.s32.totalorder %s242, %s243
      %p252 = scmp.eq.s32.totalorder %s36, 0
      %p253 = por %p251, %p252
      %p254 = scmp.ne.s32.totalorder %s242, %s243
      %p255 = scmp.eq.s32.totalorder %s37, 1
      %p256 = por %p254, %p255
      %p258 = scmp.ne.s32.totalorder %s243, %s257
      %p259 = scmp.eq.s32.totalorder %s37, 0
      %p260 = por %p258, %p259
      %s261 = ssub.s32 %s38, %s50
      %s262 = ssub.s32 %s39, %s46
      %s263 = sor.u32 %s261, %s262
      %p264 = scmp.eq.s32.totalorder %s263, 0
      %s266 = sadd.s32 %s265, 1
      %s267 = scalar_select %p264, %s265, %s266
      %p270 = pneg %p264
      %p271 = scmp.eq.s32.totalorder %s31, 1
      %p272 = por %p270, %p271
      %p273 = scmp.ne.s32.totalorder %s265, %s268
      %p274 = scmp.eq.s32.totalorder %s31, 0
      %p275 = por %p273, %p274
      %p276 = scmp.ne.s32.totalorder %s265, %s268
      %p277 = scmp.eq.s32.totalorder %s36, 1
      %p278 = por %p276, %p277
      %p279 = scmp.ne.s32.totalorder %s268, %s269
      %p280 = scmp.eq.s32.totalorder %s36, 0
      %p281 = por %p279, %p280
      %p282 = scmp.ne.s32.totalorder %s268, %s269
      %p283 = scmp.eq.s32.totalorder %s37, 1
      %p284 = por %p282, %p283
      %p286 = scmp.ne.s32.totalorder %s269, %s285
      %p287 = scmp.eq.s32.totalorder %s37, 0
      %p288 = por %p286, %p287
      %s289 = ssub.s32 %s38, %s50
      %s290 = ssub.s32 %s39, %s46
      %s291 = sor.u32 %s289, %s290
      %p292 = scmp.eq.s32.totalorder %s291, 0
      %s294 = sadd.s32 %s293, 1
      %s295 = scalar_select %p292, %s293, %s294
      %p298 = pneg %p292
      %p299 = scmp.eq.s32.totalorder %s31, 1
      %p300 = por %p298, %p299
      %p301 = scmp.ne.s32.totalorder %s293, %s296
      %p302 = scmp.eq.s32.totalorder %s31, 0
      %p303 = por %p301, %p302
      %p304 = scmp.ne.s32.totalorder %s293, %s296
      %p305 = scmp.eq.s32.totalorder %s36, 1
      %p306 = por %p304, %p305
      %p307 = scmp.ne.s32.totalorder %s296, %s297
      %p308 = scmp.eq.s32.totalorder %s36, 0
      %p309 = por %p307, %p308
      %p310 = scmp.ne.s32.totalorder %s296, %s297
      %p311 = scmp.eq.s32.totalorder %s37, 1
      %p312 = por %p310, %p311
      %p314 = scmp.ne.s32.totalorder %s297, %s313
      %p315 = scmp.eq.s32.totalorder %s37, 0
      %p316 = por %p314, %p315
      %s317 = ssub.s32 %s38, %s50
      %s318 = ssub.s32 %s39, %s46
      %s319 = sor.u32 %s317, %s318
      %p320 = scmp.eq.s32.totalorder %s319, 0
      %s322 = sadd.s32 %s321, 1
      %s323 = scalar_select %p320, %s321, %s322
      %p326 = pneg %p320
      %p327 = scmp.eq.s32.totalorder %s31, 1
      %p328 = por %p326, %p327
      %p329 = scmp.ne.s32.totalorder %s321, %s324
      %p330 = scmp.eq.s32.totalorder %s31, 0
      %p331 = por %p329, %p330
      %p332 = scmp.ne.s32.totalorder %s321, %s324
      %p333 = scmp.eq.s32.totalorder %s36, 1
      %p334 = por %p332, %p333
      %p335 = scmp.ne.s32.totalorder %s324, %s325
      %p336 = scmp.eq.s32.totalorder %s36, 0
      %p337 = por %p335, %p336
      %p338 = scmp.ne.s32.totalorder %s324, %s325
      %p339 = scmp.eq.s32.totalorder %s37, 1
      %p340 = por %p338, %p339
      %p342 = scmp.ne.s32.totalorder %s325, %s341
      %p343 = scmp.eq.s32.totalorder %s37, 0
      %p344 = por %p342, %p343
      %p345 = scmp.le.s32.totalorder 1, %s31
      %p346 = scmp.lt.s32.totalorder %s31, 3
      %p347 = pnand %p345, %p346
      %p348 = pneg %p347
      // Predicated region
      $region9: #{tpu_custom_call.1} parent=5 // pred_check
        _
      $region10: #{tpu_custom_call.1} parent=5 // pred_check_branch
        %350 = sbr.rel (%p347) target = $region12
      $region11: #{tpu_custom_call.1} parent=5 // pred_region
        %s351 = ssub.s32 %s31, 1
        // Predicated region
        $region13: #{tpu_custom_call.1} parent=11 // pred_check
          %p352 = pneg %p148
        $region14: #{tpu_custom_call.1} parent=11 // pred_check_branch
          %354 = sbr.rel (%p352) target = $region16
        $region15: #{tpu_custom_call.1} parent=11 // pred_region
          %s356 = ssub.s32 256, 256
          %357 = vsyncadd [#allocation9], %s356
          %s358 = sshll.u32 [#allocation8], 4
          %s359 = int_to_ptr.vmem [resolvable:$true] %s358
          %364 = dma.hbm_to_vmem [thread:$0]  %s3, 256, %s359, [#allocation9], 64, 64, 4
        $region16: #{tpu_custom_call.1} parent=11 // pred_fallthru
          _
        // Predicated region
        $region17: #{tpu_custom_call.1} parent=11 // pred_check
          %p365 = pneg %p169
        $region18: #{tpu_custom_call.1} parent=11 // pred_check_branch
          %367 = sbr.rel (%p365) target = $region20
        $region19: #{tpu_custom_call.1} parent=11 // pred_region
          _
        $region20: #{tpu_custom_call.1} parent=11 // pred_fallthru
          _
        // Predicated region
        $region21: #{tpu_custom_call.1} parent=11 // pred_check
          %p368 = pneg %p190
        $region22: #{tpu_custom_call.1} parent=11 // pred_check_branch
          %370 = sbr.rel (%p368) target = $region24
        $region23: #{tpu_custom_call.1} parent=11 // pred_region
          _
        $region24: #{tpu_custom_call.1} parent=11 // pred_fallthru
          _
        // Predicated region
        $region25: #{tpu_custom_call.1} parent=11 // pred_check
          %p371 = pneg %p211
        $region26: #{tpu_custom_call.1} parent=11 // pred_check_branch
          %373 = sbr.rel (%p371) target = $region28
        $region27: #{tpu_custom_call.1} parent=11 // pred_region
          _
        $region28: #{tpu_custom_call.1} parent=11 // pred_fallthru
          _
        // Predicated region
        $region29: #{tpu_custom_call.1} parent=11 // pred_check
          %p374 = pneg %p232
        $region30: #{tpu_custom_call.1} parent=11 // pred_check_branch
          %376 = sbr.rel (%p374) target = $region32
        $region31: #{tpu_custom_call.1} parent=11 // pred_region
          %s378 = ssub.s32 256, 256
          %379 = vsyncadd [#allocation9], %s378
          %s380 = sshll.u32 [#allocation10], 4
          %s381 = int_to_ptr.vmem [resolvable:$true] %s380
          %386 = dma.hbm_to_vmem [thread:$0]  %s7, 256, %s381, [#allocation9], 64, 64, 4
        $region32: #{tpu_custom_call.1} parent=11 // pred_fallthru
          _
        // Predicated region
        $region33: #{tpu_custom_call.1} parent=11 // pred_check
          %p387 = pneg %p253
        $region34: #{tpu_custom_call.1} parent=11 // pred_check_branch
          %389 = sbr.rel (%p387) target = $region36
        $region35: #{tpu_custom_call.1} parent=11 // pred_region
          _
        $region36: #{tpu_custom_call.1} parent=11 // pred_fallthru
          _
      $region12: #{tpu_custom_call.1} parent=5 // pred_fallthru
        _
      %p390 = scmp.lt.s32.totalorder %s31, 2
      // Predicated region
      $region37: #{tpu_custom_call.1} parent=5 // pred_check
        %p391 = pneg %p390
      $region38: #{tpu_custom_call.1} parent=5 // pred_check_branch
        %393 = sbr.rel (%p391) target = $region40
      $region39: #{tpu_custom_call.1} parent=5 // pred_region
        // Predicated region
        $region41: #{tpu_custom_call.1} parent=39 // pred_check
          %p394 = pneg %p65
        $region42: #{tpu_custom_call.1} parent=39 // pred_check_branch
          %396 = sbr.rel (%p394) target = $region44
        $region43: #{tpu_custom_call.1} parent=39 // pred_region
          %s397 = sand.u32 %s55, 1
          %s398 = scalar_lea.sflag [#allocation3], %s397
          %s399 = sand.u32 %s55, 1
          %s400 = smul.addr %s399, 4
          %s401 = scalar_lea.vmem [#allocation2], %s400
          %s403 = ssub.s32 64, 64
          %404 = vsyncadd %s398, %s403
          %s405 = sadd.s32 %s39, %s38
          %s406 = smul.addr %s405, 64
          %s407 = scalar_lea.hbm %s0, %s406
          %s409 = sshll.u32 %s401, 4
          %s410 = int_to_ptr.vmem [resolvable:$true] %s409
          %412 = dma.hbm_to_vmem [thread:$0]  %s407, 64, %s410, %s398
        $region44: #{tpu_custom_call.1} parent=39 // pred_fallthru
          _
        // Predicated region
        $region45: #{tpu_custom_call.1} parent=39 // pred_check
          %p413 = pneg %p93
        $region46: #{tpu_custom_call.1} parent=39 // pred_check_branch
          %415 = sbr.rel (%p413) target = $region48
        $region47: #{tpu_custom_call.1} parent=39 // pred_region
          %s416 = sand.u32 %s31, 1
          %s417 = scalar_lea.sflag [#allocation6], %s416
          %s418 = sand.u32 %s83, 1
          %s419 = smul.addr %s418, 4
          %s420 = scalar_lea.vmem [#allocation5], %s419
          %s422 = ssub.s32 64, 64
          %423 = vsyncadd %s417, %s422
          %s424 = sadd.s32 %s39, %s38
          %s425 = smul.addr %s424, 64
          %s426 = scalar_lea.hbm %s1, %s425
          %s428 = sshll.u32 %s420, 4
          %s429 = int_to_ptr.vmem [resolvable:$true] %s428
          %431 = dma.hbm_to_vmem [thread:$0]  %s426, 64, %s429, %s417
        $region48: #{tpu_custom_call.1} parent=39 // pred_fallthru
          _
        // Predicated region
        $region49: #{tpu_custom_call.1} parent=39 // pred_check
          %p432 = pneg %p121
        $region50: #{tpu_custom_call.1} parent=39 // pred_check_branch
          %434 = sbr.rel (%p432) target = $region52
        $region51: #{tpu_custom_call.1} parent=39 // pred_region
          %s435 = sand.u32 %s31, 1
          %s436 = scalar_lea.sflag [#allocation6], %s435
          %s437 = sand.u32 %s111, 1
          %s438 = smul.addr %s437, 4
          %s439 = scalar_lea.vmem [#allocation7], %s438
          %s441 = ssub.s32 64, 64
          %442 = vsyncadd %s436, %s441
          %s443 = sadd.s32 %s39, %s38
          %s444 = smul.addr %s443, 64
          %s445 = scalar_lea.hbm %s2, %s444
          %s447 = sshll.u32 %s439, 4
          %s448 = int_to_ptr.vmem [resolvable:$true] %s447
          %450 = dma.hbm_to_vmem [thread:$0]  %s445, 64, %s448, %s436
        $region52: #{tpu_custom_call.1} parent=39 // pred_fallthru
          _
      $region40: #{tpu_custom_call.1} parent=5 // pred_fallthru
        _
      %p451 = scmp.le.s32.totalorder 1, %s31
      %p452 = scmp.lt.s32.totalorder %s31, 3
      %p453 = pnand %p451, %p452
      %p454 = pneg %p453
      // Predicated region
      $region53: #{tpu_custom_call.1} parent=5 // pred_check
        _
      $region54: #{tpu_custom_call.1} parent=5 // pred_check_branch
        %456 = sbr.rel (%p453) target = $region56
      $region55: #{tpu_custom_call.1} parent=5 // pred_region
        %s457 = ssub.s32 %s31, 1
        %s458 = sand.u32 %s58, 1
        %s459 = scalar_lea.sflag [#allocation3], %s458
        %s460 = sand.u32 %s58, 1
        %s461 = smul.addr %s460, 4
        %s462 = scalar_lea.vmem [#allocation2], %s461
        // Predicated region
        $region57: #{tpu_custom_call.1} parent=55 // pred_check
          %p463 = pneg %p71
        $region58: #{tpu_custom_call.1} parent=55 // pred_check_branch
          %465 = sbr.rel (%p463) target = $region60
        $region59: #{tpu_custom_call.1} parent=55 // pred_region
          %466 = dma.done %s459, 64
        $region60: #{tpu_custom_call.1} parent=55 // pred_fallthru
          _
        %s467 = sand.u32 %s36, 1
        %s468 = scalar_lea.sflag [#allocation6], %s467
        %s469 = sand.u32 %s86, 1
        %s470 = smul.addr %s469, 4
        %s471 = scalar_lea.vmem [#allocation5], %s470
        // Predicated region
        $region61: #{tpu_custom_call.1} parent=55 // pred_check
          %p472 = pneg %p99
        $region62: #{tpu_custom_call.1} parent=55 // pred_check_branch
          %474 = sbr.rel (%p472) target = $region64
        $region63: #{tpu_custom_call.1} parent=55 // pred_region
          %475 = dma.done %s468, 64
        $region64: #{tpu_custom_call.1} parent=55 // pred_fallthru
          _
        %s476 = sand.u32 %s36, 1
        %s477 = scalar_lea.sflag [#allocation6], %s476
        %s478 = sand.u32 %s114, 1
        %s479 = smul.addr %s478, 4
        %s480 = scalar_lea.vmem [#allocation7], %s479
        // Predicated region
        $region65: #{tpu_custom_call.1} parent=55 // pred_check
          %p481 = pneg %p127
        $region66: #{tpu_custom_call.1} parent=55 // pred_check_branch
          %483 = sbr.rel (%p481) target = $region68
        $region67: #{tpu_custom_call.1} parent=55 // pred_region
          %484 = dma.done %s477, 64
        $region68: #{tpu_custom_call.1} parent=55 // pred_fallthru
          _
        // Predicated region
        $region69: #{tpu_custom_call.1} parent=55 // pred_check
          %p485 = pneg %p148
        $region70: #{tpu_custom_call.1} parent=55 // pred_check_branch
          %487 = sbr.rel (%p485) target = $region72
        $region71: #{tpu_custom_call.1} parent=55 // pred_region
          %488 = dma.done [#allocation9], 256
        $region72: #{tpu_custom_call.1} parent=55 // pred_fallthru
          _
        // Predicated region
        $region73: #{tpu_custom_call.1} parent=55 // pred_check
          %p489 = pneg %p232
        $region74: #{tpu_custom_call.1} parent=55 // pred_check_branch
          %491 = sbr.rel (%p489) target = $region76
        $region75: #{tpu_custom_call.1} parent=55 // pred_region
          %492 = dma.done [#allocation9], 256
        $region76: #{tpu_custom_call.1} parent=55 // pred_fallthru
          _
        %s493 = sand.u32 %s58, 1
        %s494 = scalar_lea.sflag [#allocation3], %s493
        %s495 = sand.u32 %s58, 1
        %s496 = smul.addr %s495, 4
        %s497 = scalar_lea.vmem [#allocation2], %s496
        %p498 = pneg %p71
        %p499 = pneg %p68
        %s500 = sand.u32 %s36, 1
        %s501 = scalar_lea.sflag [#allocation6], %s500
        %s502 = sand.u32 %s86, 1
        %s503 = smul.addr %s502, 4
        %s504 = scalar_lea.vmem [#allocation5], %s503
        %p505 = pneg %p99
        %p506 = pneg %p96
        %s507 = sand.u32 %s36, 1
        %s508 = scalar_lea.sflag [#allocation6], %s507
        %s509 = sand.u32 %s114, 1
        %s510 = smul.addr %s509, 4
        %s511 = scalar_lea.vmem [#allocation7], %s510
        %p512 = pneg %p127
        %p513 = pneg %p124
        %p514 = pneg %p148
        %p515 = pneg %p145
        %p516 = pneg %p169
        %p517 = pneg %p166
        %p518 = pneg %p190
        %p519 = pneg %p187
        %p520 = pneg %p211
        %p521 = pneg %p208
        %p522 = pneg %p232
        %p523 = pneg %p229
        %p524 = pneg %p253
        %p525 = pneg %p250
        %p526 = pneg %p281
        %p527 = pneg %p278
        %s528 = sand.u32 %s268, 1
        %s529 = scalar_lea.sflag [#allocation4], %s528
        %s530 = sand.u32 %s268, 1
        %s531 = smul.addr %s530, 16
        %s532 = scalar_lea.vmem [#allocation11], %s531
        %p533 = pneg %p309
        %p534 = pneg %p306
        %s535 = sand.u32 %s36, 1
        %s536 = scalar_lea.sflag [#allocation13], %s535
        %s537 = sand.u32 %s296, 1
        %s538 = smul.addr %s537, 16
        %s539 = scalar_lea.vmem [#allocation12], %s538
        %p540 = pneg %p337
        %p541 = pneg %p334
        %s542 = sand.u32 %s36, 1
        %s543 = scalar_lea.sflag [#allocation13], %s542
        %s544 = sand.u32 %s324, 1
        %s545 = smul.addr %s544, 16
        %s546 = scalar_lea.vmem [#allocation14], %s545
        %v548 = vld [vmem:[%s462] sm:$0xf]
        %v549 = vld [vmem:[#allocation8] sm:$0xf]
        %v550 = vld [vmem:[#allocation8 + $0x4] sm:$0xf]
        %v551 = vld [vmem:[#allocation8 + $0x8] sm:$0xf]
        %v552 = vld [vmem:[#allocation8 + $0xc] sm:$0xf]
        %v553 = vld [vmem:[%s4] sm:$0x1]
        %v555 = vlaneseq
        %v556 = vshrl.u32 %v555, 7
        %v557 = vsub.s32 0, %v556
        %v558 = vrot.slane %v553, %v557
        %v564 = vunpack.c.l.b16 %v549
        %v565 = vunpack.c.l.b16 %v550
        %v566 = vunpack.c.l.b16 %v551
        %v567 = vunpack.c.l.b16 %v552
        %v568 = vpack.c.b16 %v565, %v564
        %v569 = vpack.c.b16 %v567, %v566
        %vm572 = vcmask 261120
        %v574 = vsel %vm572, %v548, 0
        %576 = vmatprep.subr.bf16.mxu0 0
        %577 = vmatpush1.bf16.msra.mxu0 %v568
        %578 = vmatprep.subr.bf16.mxu0 0
        %579 = vmatpush1.bf16.msra.mxu0 %v569
        %580 = vmatprep.subr.bf16.mxu0 0
        %581 = vmatpush1.bf16.msra.mxu0 0
        %582 = vmatprep.subr.bf16.mxu0 0
        %583 = vmatpush1.bf16.msra.mxu0 0
        %584 = vmatprep.subr.bf16.mxu0 0
        %585 = vmatpush1.bf16.msra.mxu0 0
        %586 = vmatprep.subr.bf16.mxu0 0
        %587 = vmatpush1.bf16.msra.mxu0 0
        %588 = vmatprep.subr.bf16.mxu0 0
        %589 = vmatpush1.bf16.msra.mxu0 0
        %590 = vmatprep.subr.bf16.mxu0 0
        %591 = vmatpush1.bf16.msra.mxu0 0
        %592 = vmatprep.subr.bf16.mxu0 0
        %593 = vmatpush1.bf16.msra.mxu0 0
        %594 = vmatprep.subr.bf16.mxu0 0
        %595 = vmatpush1.bf16.msra.mxu0 0
        %596 = vmatprep.subr.bf16.mxu0 0
        %597 = vmatpush1.bf16.msra.mxu0 0
        %598 = vmatprep.subr.bf16.mxu0 0
        %599 = vmatpush1.bf16.msra.mxu0 0
        %600 = vmatprep.subr.bf16.mxu0 0
        %601 = vmatpush1.bf16.msra.mxu0 0
        %602 = vmatprep.subr.bf16.mxu0 0
        %603 = vmatpush1.bf16.msra.mxu0 0
        %604 = vmatprep.subr.bf16.mxu0 0
        %605 = vmatpush1.bf16.msra.mxu0 0
        %606 = vmatprep.subr.bf16.mxu0 0
        %607 = vmatpush1.bf16.msra.mxu0 0
        %608 = vmatprep.mubr.bf16.mxu0 0
        %609 = vmatmul.mubr.bf16.gmra.mrb[0].mxu0 %v574
        %v610 = vpop.f32.mrb[0].mxu0
        %v611 = vadd.f32 %v558, %v610
        %v612 = vpop.f32.mrb[0].mxu0
        %v613 = vpop.f32.mrb[0].mxu0
        %v614 = vpop.f32.mrb[0].mxu0
        %615 = vdwg.mxu0
        %v616 = vpack.c.bf16 %v611, %v611
        %vm617 = vcmask 60416
        %618 = vst.msk [vmem:[%s532] sm:$0xf] %vm617, %v616
        %v620 = vunpack.c.l.b16 %v616
        %v621 = vpack.c.b16 %v620, %v620
        %622 = vrot.lane.b32.xlu0 %v621, 120
        %v623 = vpop.permute.xlu0 %622
        %s625 = scalar_lea.vmem %s532, 4 [#allocation11]
        %626 = vst.msk [vmem:[%s625] sm:$0xf] %vm617, %v623
        %627 = vrot.lane.b32.xlu0 %v621, 112
        %v628 = vpop.permute.xlu0 %627
        %s630 = scalar_lea.vmem %s532, 8 [#allocation11]
        %631 = vst.msk [vmem:[%s630] sm:$0xf] %vm617, %v628
        %632 = vrot.lane.b32.xlu0 %v621, 104
        %v633 = vpop.permute.xlu0 %632
        %s635 = scalar_lea.vmem %s532, 12 [#allocation11]
        %636 = vst.msk [vmem:[%s635] sm:$0xf] %vm617, %v633
        %v637 = vld [vmem:[%s471] sm:$0xf]
        %v638 = vld [vmem:[%s5] sm:$0xf]
        %v639 = vld [vmem:[%s5 + $0x4] sm:$0xf]
        %v640 = vld [vmem:[%s5 + $0x8] sm:$0xf]
        %v641 = vld [vmem:[%s5 + $0xc] sm:$0xf]
        %v642 = vld [vmem:[%s6] sm:$0x1]
        %v644 = vlaneseq
        %v645 = vshrl.u32 %v644, 7
        %v646 = vsub.s32 0, %v645
        %v647 = vrot.slane %v642, %v646
        %v653 = vunpack.c.l.b16 %v638
        %v654 = vunpack.c.l.b16 %v639
        %v655 = vunpack.c.l.b16 %v640
        %v656 = vunpack.c.l.b16 %v641
        %v657 = vpack.c.b16 %v654, %v653
        %v658 = vpack.c.b16 %v656, %v655
        %v662 = vsel %vm572, %v637, 0
        %664 = vmatprep.subr.bf16.mxu0 0
        %665 = vmatpush1.bf16.msra.mxu0 %v657
        %666 = vmatprep.subr.bf16.mxu0 0
        %667 = vmatpush1.bf16.msra.mxu0 %v658
        %668 = vmatprep.subr.bf16.mxu0 0
        %669 = vmatpush1.bf16.msra.mxu0 0
        %670 = vmatprep.subr.bf16.mxu0 0
        %671 = vmatpush1.bf16.msra.mxu0 0
        %672 = vmatprep.subr.bf16.mxu0 0
        %673 = vmatpush1.bf16.msra.mxu0 0
        %674 = vmatprep.subr.bf16.mxu0 0
        %675 = vmatpush1.bf16.msra.mxu0 0
        %676 = vmatprep.subr.bf16.mxu0 0
        %677 = vmatpush1.bf16.msra.mxu0 0
        %678 = vmatprep.subr.bf16.mxu0 0
        %679 = vmatpush1.bf16.msra.mxu0 0
        %680 = vmatprep.subr.bf16.mxu0 0
        %681 = vmatpush1.bf16.msra.mxu0 0
        %682 = vmatprep.subr.bf16.mxu0 0
        %683 = vmatpush1.bf16.msra.mxu0 0
        %684 = vmatprep.subr.bf16.mxu0 0
        %685 = vmatpush1.bf16.msra.mxu0 0
        %686 = vmatprep.subr.bf16.mxu0 0
        %687 = vmatpush1.bf16.msra.mxu0 0
        %688 = vmatprep.subr.bf16.mxu0 0
        %689 = vmatpush1.bf16.msra.mxu0 0
        %690 = vmatprep.subr.bf16.mxu0 0
        %691 = vmatpush1.bf16.msra.mxu0 0
        %692 = vmatprep.subr.bf16.mxu0 0
        %693 = vmatpush1.bf16.msra.mxu0 0
        %694 = vmatprep.subr.bf16.mxu0 0
        %695 = vmatpush1.bf16.msra.mxu0 0
        %696 = vmatprep.mubr.bf16.mxu0 0
        %697 = vmatmul.mubr.bf16.gmra.mrb[0].mxu0 %v662
        %v698 = vpop.f32.mrb[0].mxu0
        %v699 = vadd.f32 %v647, %v698
        %v700 = vpop.f32.mrb[0].mxu0
        %v701 = vpop.f32.mrb[0].mxu0
        %v702 = vpop.f32.mrb[0].mxu0
        %703 = vdwg.mxu0
        %v704 = vpack.c.bf16 %v699, %v699
        %705 = vst.msk [vmem:[%s539] sm:$0xf] %vm617, %v704
        %v707 = vunpack.c.l.b16 %v704
        %v708 = vpack.c.b16 %v707, %v707
        %709 = vrot.lane.b32.xlu0 %v708, 120
        %v710 = vpop.permute.xlu0 %709
        %s712 = scalar_lea.vmem %s539, 4 [#allocation12]
        %713 = vst.msk [vmem:[%s712] sm:$0xf] %vm617, %v710
        %714 = vrot.lane.b32.xlu0 %v708, 112
        %v715 = vpop.permute.xlu0 %714
        %s717 = scalar_lea.vmem %s539, 8 [#allocation12]
        %718 = vst.msk [vmem:[%s717] sm:$0xf] %vm617, %v715
        %719 = vrot.lane.b32.xlu0 %v708, 104
        %v720 = vpop.permute.xlu0 %719
        %s722 = scalar_lea.vmem %s539, 12 [#allocation12]
        %723 = vst.msk [vmem:[%s722] sm:$0xf] %vm617, %v720
        %v724 = vld [vmem:[%s480] sm:$0xf]
        %v725 = vld [vmem:[#allocation10] sm:$0xf]
        %v726 = vld [vmem:[#allocation10 + $0x4] sm:$0xf]
        %v727 = vld [vmem:[#allocation10 + $0x8] sm:$0xf]
        %v728 = vld [vmem:[#allocation10 + $0xc] sm:$0xf]
        %v729 = vld [vmem:[%s8] sm:$0x1]
        %v731 = vlaneseq
        %v732 = vshrl.u32 %v731, 7
        %v733 = vsub.s32 0, %v732
        %v734 = vrot.slane %v729, %v733
        %v740 = vunpack.c.l.b16 %v725
        %v741 = vunpack.c.l.b16 %v726
        %v742 = vunpack.c.l.b16 %v727
        %v743 = vunpack.c.l.b16 %v728
        %v744 = vpack.c.b16 %v741, %v740
        %v745 = vpack.c.b16 %v743, %v742
        %v749 = vsel %vm572, %v724, 0
        %751 = vmatprep.subr.bf16.mxu0 0
        %752 = vmatpush1.bf16.msra.mxu0 %v744
        %753 = vmatprep.subr.bf16.mxu0 0
        %754 = vmatpush1.bf16.msra.mxu0 %v745
        %755 = vmatprep.subr.bf16.mxu0 0
        %756 = vmatpush1.bf16.msra.mxu0 0
        %757 = vmatprep.subr.bf16.mxu0 0
        %758 = vmatpush1.bf16.msra.mxu0 0
        %759 = vmatprep.subr.bf16.mxu0 0
        %760 = vmatpush1.bf16.msra.mxu0 0
        %761 = vmatprep.subr.bf16.mxu0 0
        %762 = vmatpush1.bf16.msra.mxu0 0
        %763 = vmatprep.subr.bf16.mxu0 0
        %764 = vmatpush1.bf16.msra.mxu0 0
        %765 = vmatprep.subr.bf16.mxu0 0
        %766 = vmatpush1.bf16.msra.mxu0 0
        %767 = vmatprep.subr.bf16.mxu0 0
        %768 = vmatpush1.bf16.msra.mxu0 0
        %769 = vmatprep.subr.bf16.mxu0 0
        %770 = vmatpush1.bf16.msra.mxu0 0
        %771 = vmatprep.subr.bf16.mxu0 0
        %772 = vmatpush1.bf16.msra.mxu0 0
        %773 = vmatprep.subr.bf16.mxu0 0
        %774 = vmatpush1.bf16.msra.mxu0 0
        %775 = vmatprep.subr.bf16.mxu0 0
        %776 = vmatpush1.bf16.msra.mxu0 0
        %777 = vmatprep.subr.bf16.mxu0 0
        %778 = vmatpush1.bf16.msra.mxu0 0
        %779 = vmatprep.subr.bf16.mxu0 0
        %780 = vmatpush1.bf16.msra.mxu0 0
        %781 = vmatprep.subr.bf16.mxu0 0
        %782 = vmatpush1.bf16.msra.mxu0 0
        %783 = vmatprep.mubr.bf16.mxu0 0
        %784 = vmatmul.mubr.bf16.gmra.mrb[0].mxu0 %v749
        %v785 = vpop.f32.mrb[0].mxu0
        %v786 = vadd.f32 %v734, %v785
        %v787 = vpop.f32.mrb[0].mxu0
        %v788 = vpop.f32.mrb[0].mxu0
        %v789 = vpop.f32.mrb[0].mxu0
        %790 = vdwg.mxu0
        %v791 = vpack.c.bf16 %v786, %v786
        %792 = vst.msk [vmem:[%s546] sm:$0xf] %vm617, %v791
        %v794 = vunpack.c.l.b16 %v791
        %v795 = vpack.c.b16 %v794, %v794
        %796 = vrot.lane.b32.xlu0 %v795, 120
        %v797 = vpop.permute.xlu0 %796
        %s799 = scalar_lea.vmem %s546, 4 [#allocation14]
        %800 = vst.msk [vmem:[%s799] sm:$0xf] %vm617, %v797
        %801 = vrot.lane.b32.xlu0 %v795, 112
        %v802 = vpop.permute.xlu0 %801
        %s804 = scalar_lea.vmem %s546, 8 [#allocation14]
        %805 = vst.msk [vmem:[%s804] sm:$0xf] %vm617, %v802
        %806 = vrot.lane.b32.xlu0 %v795, 104
        %v807 = vpop.permute.xlu0 %806
        %s809 = scalar_lea.vmem %s546, 12 [#allocation14]
        %810 = vst.msk [vmem:[%s809] sm:$0xf] %vm617, %v807
        %s811 = sand.u32 %s268, 1
        %s812 = scalar_lea.sflag [#allocation4], %s811
        %s813 = sand.u32 %s268, 1
        %s814 = smul.addr %s813, 16
        %s815 = scalar_lea.vmem [#allocation11], %s814
        %s816 = sand.u32 %s36, 1
        %s817 = scalar_lea.sflag [#allocation13], %s816
        %s818 = sand.u32 %s296, 1
        %s819 = smul.addr %s818, 16
        %s820 = scalar_lea.vmem [#allocation12], %s819
        %s821 = sand.u32 %s36, 1
        %s822 = scalar_lea.sflag [#allocation13], %s821
        %s823 = sand.u32 %s324, 1
        %s824 = smul.addr %s823, 16
        %s825 = scalar_lea.vmem [#allocation14], %s824
        // Predicated region
        $region77: #{tpu_custom_call.1} parent=55 // pred_check
          %p826 = pneg %p278
        $region78: #{tpu_custom_call.1} parent=55 // pred_check_branch
          %828 = sbr.rel (%p826) target = $region80
        $region79: #{tpu_custom_call.1} parent=55 // pred_region
          %s830 = ssub.s32 256, 256
          %831 = vsyncadd %s812, %s830
          %s832 = smul.addr %s40, 4
          %s833 = sadd.s32 %s41, %s832
          %s834 = smul.addr %s833, 64
          %s835 = scalar_lea.hbm %s9, %s834
          %s836 = sshll.u32 %s815, 4
          %s837 = int_to_ptr.vmem [resolvable:$true] %s836
          %842 = dma.vmem_to_hbm [thread:$0]  %s837, 256, %s835, %s812, 64, 64, 4
        $region80: #{tpu_custom_call.1} parent=55 // pred_fallthru
          _
        // Predicated region
        $region81: #{tpu_custom_call.1} parent=55 // pred_check
          %p843 = pneg %p306
        $region82: #{tpu_custom_call.1} parent=55 // pred_check_branch
          %845 = sbr.rel (%p843) target = $region84
        $region83: #{tpu_custom_call.1} parent=55 // pred_region
          %s847 = ssub.s32 256, 256
          %848 = vsyncadd %s817, %s847
          %s849 = smul.addr %s40, 4
          %s850 = sadd.s32 %s41, %s849
          %s851 = smul.addr %s850, 64
          %s852 = scalar_lea.hbm %s10, %s851
          %s853 = sshll.u32 %s820, 4
          %s854 = int_to_ptr.vmem [resolvable:$true] %s853
          %859 = dma.vmem_to_hbm [thread:$0]  %s854, 256, %s852, %s817, 64, 64, 4
        $region84: #{tpu_custom_call.1} parent=55 // pred_fallthru
          _
        // Predicated region
        $region85: #{tpu_custom_call.1} parent=55 // pred_check
          %p860 = pneg %p334
        $region86: #{tpu_custom_call.1} parent=55 // pred_check_branch
          %862 = sbr.rel (%p860) target = $region88
        $region87: #{tpu_custom_call.1} parent=55 // pred_region
          %s864 = ssub.s32 256, 256
          %865 = vsyncadd %s822, %s864
          %s866 = smul.addr %s40, 4
          %s867 = sadd.s32 %s41, %s866
          %s868 = smul.addr %s867, 64
          %s869 = scalar_lea.hbm %s11, %s868
          %s870 = sshll.u32 %s825, 4
          %s871 = int_to_ptr.vmem [resolvable:$true] %s870
          %876 = dma.vmem_to_hbm [thread:$0]  %s871, 256, %s869, %s822, 64, 64, 4
        $region88: #{tpu_custom_call.1} parent=55 // pred_fallthru
          _
      $region56: #{tpu_custom_call.1} parent=5 // pred_fallthru
        _
      %p877 = scmp.le.s32.totalorder 2, %s31
      // Predicated region
      $region89: #{tpu_custom_call.1} parent=5 // pred_check
        %p878 = pneg %p877
      $region90: #{tpu_custom_call.1} parent=5 // pred_check_branch
        %880 = sbr.rel (%p878) target = $region92
      $region91: #{tpu_custom_call.1} parent=5 // pred_region
        %s881 = ssub.s32 %s31, 2
        // Predicated region
        $region93: #{tpu_custom_call.1} parent=91 // pred_check
          %p882 = pneg %p284
        $region94: #{tpu_custom_call.1} parent=91 // pred_check_branch
          %884 = sbr.rel (%p882) target = $region96
        $region95: #{tpu_custom_call.1} parent=91 // pred_region
          %s885 = sand.u32 %s269, 1
          %s886 = scalar_lea.sflag [#allocation4], %s885
          %s887 = sand.u32 %s269, 1
          %s888 = smul.addr %s887, 16
          %s889 = scalar_lea.vmem [#allocation11], %s888
          %890 = dma.done %s886, 256
        $region96: #{tpu_custom_call.1} parent=91 // pred_fallthru
          _
        // Predicated region
        $region97: #{tpu_custom_call.1} parent=91 // pred_check
          %p891 = pneg %p312
        $region98: #{tpu_custom_call.1} parent=91 // pred_check_branch
          %893 = sbr.rel (%p891) target = $region100
        $region99: #{tpu_custom_call.1} parent=91 // pred_region
          %s894 = sand.u32 %s37, 1
          %s895 = scalar_lea.sflag [#allocation13], %s894
          %s896 = sand.u32 %s297, 1
          %s897 = smul.addr %s896, 16
          %s898 = scalar_lea.vmem [#allocation12], %s897
          %899 = dma.done %s895, 256
        $region100: #{tpu_custom_call.1} parent=91 // pred_fallthru
          _
        // Predicated region
        $region101: #{tpu_custom_call.1} parent=91 // pred_check
          %p900 = pneg %p340
        $region102: #{tpu_custom_call.1} parent=91 // pred_check_branch
          %902 = sbr.rel (%p900) target = $region104
        $region103: #{tpu_custom_call.1} parent=91 // pred_region
          %s903 = sand.u32 %s37, 1
          %s904 = scalar_lea.sflag [#allocation13], %s903
          %s905 = sand.u32 %s325, 1
          %s906 = smul.addr %s905, 16
          %s907 = scalar_lea.vmem [#allocation14], %s906
          %908 = dma.done %s904, 256
        $region104: #{tpu_custom_call.1} parent=91 // pred_fallthru
          _
      $region92: #{tpu_custom_call.1} parent=5 // pred_fallthru
        _
    $region6: #{tpu_custom_call.1} parent=1 // loop_footer
      %s35 = sadd.s32 1, %s31
    $region7: #{tpu_custom_call.1} parent=1 // loop_footer_branch
      %30 = sbr.rel target = $region3
    $region8: #{tpu_custom_call.1} parent=1 // loop_exit
      _
    %909 = vsyncpa [#allocation3], 1
    %s910 = scalar_lea.sflag [#allocation3], 1
    %911 = vsyncpa %s910, 1
    %912 = vsyncpa [#allocation6], 1
    %s913 = scalar_lea.sflag [#allocation6], 1
    %914 = vsyncpa %s913, 1
    %915 = vsyncpa [#allocation9], 1
    %916 = vsyncpa [#allocation4], 1
    %s917 = scalar_lea.sflag [#allocation4], 1
    %918 = vsyncpa %s917, 1
    %919 = vsyncpa [#allocation13], 1
    %s920 = scalar_lea.sflag [#allocation13], 1
    %921 = vsyncpa %s920, 1

</llo_original>
